<compile_context>
chip_gen: v6e
topology: v6e:2x2x1
jax: 0.10.0
libtpu: 0.0.40
codegen_flags: <defaults>
</compile_context>

<pallas_src>
import math
from functools import lru_cache

import jax
import jax.numpy as jnp
from jax.experimental import pallas as pl
from jax.experimental.pallas import tpu as pltpu


# Below ~1 MiB the XLA-fused broadcast add (which can also fuse into neighbours)
# beats a standalone pallas_call (launch + per-step overhead is a few us).
_MIN_PALLAS_BYTES = 1 * 1024 * 1024


@lru_cache(maxsize=1)
def _block_params():
    """(target_block_bytes, vmem_limit_bytes) tuned per TPU generation."""
    vmem_bytes = 0
    try:
        info_fn = getattr(pltpu, "get_tpu_info", None)
        vmem_bytes = int(getattr(info_fn(), "vmem_capacity_bytes", 0)) if info_fn else 0
    except Exception:
        vmem_bytes = 0
    if vmem_bytes >= 100 * 1024 * 1024:
        # v5e / v6e: 128 MiB physical VMEM -> plenty of headroom for 8 MiB blocks.
        return 8 * 1024 * 1024, 64 * 1024 * 1024
    # v7x (64 MiB physical per TensorCore) or unknown: 2x double-buffered
    # (x + out + pe) at 8 MiB x-blocks is ~34-40 MiB, under a 48 MiB scoped cap.
    return 8 * 1024 * 1024, 48 * 1024 * 1024


def _add_pe_kernel(x_ref, pe_ref, o_ref):
    # x_ref / o_ref: (ts, B*D) lane-dense blocks; pe_ref: (ts, D) dense block.
    batch = x_ref.shape[1] // pe_ref.shape[1]
    pe = pe_ref[...].astype(jnp.float32)          # per-block cast only
    if batch > 1:
        # d_model % 128 == 0 (checked in the wrapper): lane-aligned concatenate
        # -> zero data movement, just vreg re-indexing.
        pe = jnp.concatenate([pe] * batch, axis=-1)
    # Promote-then-add (matches the f32 table semantics), single cast on store.
    o_ref[...] = (x_ref[...].astype(jnp.float32) + pe).astype(o_ref.dtype)


def make_positional_encoding_table(d_model: int, max_len: int = 5000,
                                   dtype=jnp.float32) -> jnp.ndarray:
    """Same values as the PyTorch buffer, stored dense as (max_len, d_model)."""
    position = jnp.arange(max_len, dtype=jnp.float32)[:, None]               # (max_len, 1)
    div_term = jnp.exp(jnp.arange(0, d_model, 2, dtype=jnp.float32)
                       * (-math.log(10000.0) / d_model))                     # (d_model/2,)
    angles = position * div_term                                             # (max_len, d_model/2)
    pe = jnp.zeros((max_len, d_model), dtype=jnp.float32)
    pe = pe.at[:, 0::2].set(jnp.sin(angles))
    pe = pe.at[:, 1::2].set(jnp.cos(angles))
    return pe.astype(dtype)


def _fallback_add(x, pe2d, seq_len):
    y = x.astype(jnp.float32) + pe2d[:seq_len][:, None, :].astype(jnp.float32)
    return y.astype(x.dtype)


def positional_encoding(x: jnp.ndarray, pe: jnp.ndarray) -> jnp.ndarray:
    """y = x + pe[:S] (broadcast over batch). x: (S, B, D); pe: (max_len, D) or (max_len, 1, D)."""
    S, B, D = x.shape
    if pe.ndim == 3:                       # accept the PyTorch-style buffer layout
        pe = pe.reshape(pe.shape[0], pe.shape[-1])
    assert pe.ndim == 2 and pe.shape[1] == D, "pe table has wrong d_model"
    assert S <= pe.shape[0], "sequence length exceeds positional table"

    nbytes = x.size * x.dtype.itemsize
    if nbytes < _MIN_PALLAS_BYTES or D % 128 != 0:
        # Tiny input, or a d_model that is not lane-aligned: the XLA-fused
        # broadcast add is the right tool.
        # TODO(synk): add a 3-D-block Pallas variant for d_model % 128 != 0.
        return _fallback_add(x, pe, S)

    target_block_bytes, vmem_limit = _block_params()

    # --- sequence-tile size ---------------------------------------------------
    itemsize = x.dtype.itemsize
    gran = max(8, 32 // itemsize)               # 8 rows f32, 16 bf16, 32 int8
    bytes_per_row = B * D * itemsize
    ts = max(1, target_block_bytes // bytes_per_row)
    ts = min(ts, S)
    if S >= 4 * gran:
        # Keep >= 4 grid steps: v7x's two TensorCores split the "parallel" S axis
        # and each still needs >= 2 steps to double-buffer against.
        ts = min(ts, (S // 4 // gran) * gran)
    if ts < S:
        ts = max(gran, (ts // gran) * gran)
        ts = min(ts, S)

    # Double-buffered x + out + pe blocks must fit under the scoped VMEM limit
    # (small headroom left for Mosaic-internal scratch).
    def _fits(t):
        return 2 * (2 * t * bytes_per_row + t * D * pe.dtype.itemsize) <= vmem_limit - (4 << 20)

    while ts > gran and not _fits(ts):
        ts = max(gran, ((ts // 2) // gran) * gran)
    if not _fits(ts):
        return _fallback_add(x, pe, S)          # pathological B*D; stay correct

    # Prefer a ts that divides S so the last grid step is not a ragged,
    # partially-masked block.
    if ts < S and S % ts != 0:
        for cand in range(ts, max(gran, ts - 8 * gran) - 1, -gran):
            if S % cand == 0:
                ts = cand
                break

    # --- pallas call on the lane-dense 2-D view --------------------------------
    x2d = x.reshape(S, B * D)                   # free: trailing dims are contiguous
    out2d = pl.pallas_call(
        _add_pe_kernel,
        out_shape=jax.ShapeDtypeStruct((S, B * D), x.dtype),
        grid=(pl.cdiv(S, ts),),
        in_specs=[
            pl.BlockSpec((ts, B * D), lambda s: (s, 0)),
            # Windows directly into the dense table: only the ts rows actually
            # needed are streamed, with no padded unit dim and no table copy.
            pl.BlockSpec((ts, D), lambda s: (s, 0)),
        ],
        out_specs=pl.BlockSpec((ts, B * D), lambda s: (s, 0)),
        compiler_params=pltpu.CompilerParams(
            dimension_semantics=("parallel",),
            vmem_limit_bytes=vmem_limit,
        ),
    )(x2d, pe)
    return out2d.reshape(S, B, D)


if __name__ == "__main__":
    key = jax.random.PRNGKey(0)

    # 1) Small module-consistent shapes (seq=8, batch=2, d_model=32)
    #    -> XLA-fused fallback path.
    S, B, D = 8, 2, 32
    x_small = jax.random.normal(key, (S, B, D), dtype=jnp.float32)
    pe_small = make_positional_encoding_table(d_model=D, max_len=64)
    y_small = jax.block_until_ready(positional_encoding(x_small, pe_small))
    ref_small = x_small + pe_small[:S][:, None, :]
    assert y_small.shape == (S, B, D)
    assert jnp.allclose(y_small, ref_small, atol=1e-6, rtol=1e-6)

    # 2) Transformer-sized f32 input -> tiled Pallas path (lane-dense 2-D view).
    S2, B2, D2 = 512, 8, 256
    k1, _ = jax.random.split(key)
    x_big = jax.random.normal(k1, (S2, B2, D2), dtype=jnp.float32)
    pe_big = make_positional_encoding_table(d_model=D2, max_len=2048)
    y_big = jax.block_until_ready(positional_encoding(x_big, pe_big))
    ref_big = x_big + pe_big[:S2][:, None, :]
    assert y_big.shape == (S2, B2, D2)
    assert jnp.allclose(y_big, ref_big, atol=1e-5, rtol=1e-5)

    # 3) bf16 activations against the f32 table (per-block cast inside the kernel).
    x_bf16 = x_big.astype(jnp.bfloat16)
    y_bf16 = jax.block_until_ready(positional_encoding(x_bf16, pe_big))
    ref_bf16 = (x_bf16.astype(jnp.float32) + pe_big[:S2][:, None, :]).astype(jnp.bfloat16)
    assert y_bf16.dtype == jnp.bfloat16
    assert jnp.allclose(y_bf16.astype(jnp.float32), ref_bf16.astype(jnp.float32),
                        atol=5e-2, rtol=5e-2)

    # 4) The PyTorch-shaped (max_len, 1, d_model) buffer is accepted unchanged.
    y_buf = jax.block_until_ready(positional_encoding(x_big, pe_big[:, None, :]))
    assert jnp.allclose(y_buf, ref_big, atol=1e-5, rtol=1e-5)

    print("KERNEL_OK")
</pallas_src>

<mosaic_0001>
module attributes {stable_mosaic.version = 11 : i64} {
  func.func @_add_pe_kernel(%arg0: i32, %arg1: memref<128x2048xf32, #tpu.memory_space<vmem>>, %arg2: memref<128x256xf32, #tpu.memory_space<vmem>>, %arg3: memref<128x2048xf32, #tpu.memory_space<vmem>>) attributes {dimension_semantics = [#tpu.dimension_semantics<parallel>], iteration_bounds = array<i64: 4>, scalar_prefetch = 0 : i64, scratch_operands = 0 : i64, tpu.core_type = #tpu.core_type<tc>, window_params = [{transform_indices = @transform_0, window_bounds = array<i64: 128, 2048>}, {transform_indices = @transform_1, window_bounds = array<i64: 128, 256>}, {transform_indices = @transform_2, window_bounds = array<i64: 128, 2048>}]} {
    %c0 = arith.constant 0 : index
    %c0_0 = arith.constant 0 : index
    %0 = vector.load %arg2[%c0, %c0_0] : memref<128x256xf32, #tpu.memory_space<vmem>>, vector<128x256xf32>
    %1 = tpu.concatenate %0, %0, %0, %0, %0, %0, %0, %0 in 1 : vector<128x256xf32>, vector<128x256xf32>, vector<128x256xf32>, vector<128x256xf32>, vector<128x256xf32>, vector<128x256xf32>, vector<128x256xf32>, vector<128x256xf32> -> vector<128x2048xf32>
    %c0_1 = arith.constant 0 : index
    %c0_2 = arith.constant 0 : index
    %2 = vector.load %arg1[%c0_1, %c0_2] : memref<128x2048xf32, #tpu.memory_space<vmem>>, vector<128x2048xf32>
    %3 = arith.addf %2, %1 : vector<128x2048xf32>
    %c0_3 = arith.constant 0 : index
    %c0_4 = arith.constant 0 : index
    %4 = vector.load %arg3[%c0_3, %c0_4] : memref<128x2048xf32, #tpu.memory_space<vmem>>, vector<128x2048xf32>
    tpu.vector_store %arg3[%c0_3, %c0_4], %3 {strides = array<i32>} : memref<128x2048xf32, #tpu.memory_space<vmem>>, vector<128x2048xf32>,
    return
  }
  func.func @transform_0(%arg0: i32) -> (i32, i32) {
    %c0_i32 = arith.constant 0 : i32
    %c0_i32_0 = arith.constant 0 : i32
    return %arg0, %c0_i32 : i32, i32
  }
  func.func @transform_1(%arg0: i32) -> (i32, i32) {
    %c0_i32 = arith.constant 0 : i32
    %c0_i32_0 = arith.constant 0 : i32
    return %arg0, %c0_i32 : i32, i32
  }
  func.func @transform_2(%arg0: i32) -> (i32, i32) {
    %c0_i32 = arith.constant 0 : i32
    %c0_i32_0 = arith.constant 0 : i32
    return %arg0, %c0_i32 : i32, i32
  }
}

</mosaic_0001>

<llo_original>
// kernel: tpu_custom_call.1
$region0: #{tpu_custom_call.1}
  #allocation0 [shape = 'u32[]', space=smem, size = 0x4, offset = 0x4, fixed_abs, tag = 'smem constant byte address 0x4 - core index']
  #allocation1 [shape = 'u32[144,128]{1,0:T(1,128)}', space=vmem, size = 0x12000, scoped, tag = 'internal scratch']
  %s0 = inlined_call_operand.hbm [shape: f32[512,2048], index: 0, kind: input, shape index: {}]
  %s1 = inlined_call_operand.hbm [shape: f32[2048,256], index: 1, kind: input, shape index: {}]
  %s2 = inlined_call_operand.hbm [shape: f32[512,2048], index: 2, kind: output, shape index: {}]
  %s3 = sld [smem:[#allocation0]]
  $region49: #{tpu_custom_call.1} parent=0
    _
  %s5 = ssub.s32 1, %s3
  %s6 = scalar_select 0, %s5, %s3
  $region1: #{tpu_custom_call.1} parent=0
    #allocation2 [shape = 'u8[2097152]{0}', space=vmem, size = 0x200000, scoped, tag = 'input window, operand 0']
    #allocation3 [shape = 's32[2]{0}', space=sflag, size = 0x8, scoped, tag = 'scoped memory for tpu_custom_call.1']
    #allocation4 [shape = 's32[2]{0}', space=sflag, size = 0x8, scoped, tag = 'scoped memory for tpu_custom_call.1']
    #allocation5 [shape = 'u8[262144]{0}', space=vmem, size = 0x40000, scoped, tag = 'input window, operand 1']
    #allocation6 [shape = 's32[2]{0}', space=sflag, size = 0x8, scoped, tag = 'scoped memory for tpu_custom_call.1']
    #allocation7 [shape = 'u8[2097152]{0}', space=vmem, size = 0x200000, scoped, tag = 'output window, operand 0']
    %7 = vsyncpa [#allocation3], 0
    %s8 = scalar_lea.sflag [#allocation3], 1
    %9 = vsyncpa %s8, 0
    %10 = vsyncpa [#allocation6], 0
    %s11 = scalar_lea.sflag [#allocation6], 1
    %12 = vsyncpa %s11, 0
    %13 = vsyncpa [#allocation4], 0
    %s14 = scalar_lea.sflag [#allocation4], 1
    %15 = vsyncpa %s14, 0
    loop: start=0, step=1, limit=6
    $region2: #{tpu_custom_call.1} parent=1 // loop_pre_header
      _
    $region3: #{tpu_custom_call.1} parent=1 // loop_header
      %s17 = sphi 0, %s21
      %p18 = scmp.ge.s32.totalorder %s17, 6
      %s27 = sphi 0, %s29
      %s30 = sphi 0, %s27
      %s31 = sphi 0, %s30
      %s47 = sphi 0, %s31
      %s53 = sphi 0, %s55
      %s56 = sphi 0, %s53
      %s57 = sphi 0, %s56
      %s73 = sphi 0, %s57
      %s79 = sphi 0, %s81
      %s82 = sphi 0, %s79
      %s83 = sphi 0, %s82
      %s99 = sphi 0, %s83
    $region4: #{tpu_custom_call.1} parent=1 // loop_header_branch
      %20 = sbr.rel (%p18) target = $region8
    $region5: #{tpu_custom_call.1} parent=1 // loop_body
      %s22 = ssub.s32 %s17, 1
      %s23 = ssub.s32 %s17, 2
      %s24 = sadd.s32 %s17, 1
      %s25 = ssub.s32 %s17, %s24
      %p26 = scmp.eq.s32.totalorder %s25, 0
      %s28 = sadd.s32 %s27, 1
      %s29 = scalar_select %p26, %s27, %s28
      %p32 = pneg %p26
      %p33 = scmp.eq.s32.totalorder %s17, 3
      %p34 = por %p32, %p33
      %p35 = scmp.ne.s32.totalorder %s27, %s30
      %p36 = scmp.eq.s32.totalorder %s17, 0
      %p37 = por %p35, %p36
      %p38 = scmp.ne.s32.totalorder %s27, %s30
      %p39 = scmp.eq.s32.totalorder %s22, 3
      %p40 = por %p38, %p39
      %p41 = scmp.ne.s32.totalorder %s30, %s31
      %p42 = scmp.eq.s32.totalorder %s22, 0
      %p43 = por %p41, %p42
      %p44 = scmp.ne.s32.totalorder %s30, %s31
      %p45 = scmp.eq.s32.totalorder %s23, 3
      %p46 = por %p44, %p45
      %p48 = scmp.ne.s32.totalorder %s31, %s47
      %p49 = scmp.eq.s32.totalorder %s23, 0
      %p50 = por %p48, %p49
      %s51 = ssub.s32 %s17, %s24
      %p52 = scmp.eq.s32.totalorder %s51, 0
      %s54 = sadd.s32 %s53, 1
      %s55 = scalar_select %p52, %s53, %s54
      %p58 = pneg %p52
      %p59 = scmp.eq.s32.totalorder %s17, 3
      %p60 = por %p58, %p59
      %p61 = scmp.ne.s32.totalorder %s53, %s56
      %p62 = scmp.eq.s32.totalorder %s17, 0
      %p63 = por %p61, %p62
      %p64 = scmp.ne.s32.totalorder %s53, %s56
      %p65 = scmp.eq.s32.totalorder %s22, 3
      %p66 = por %p64, %p65
      %p67 = scmp.ne.s32.totalorder %s56, %s57
      %p68 = scmp.eq.s32.totalorder %s22, 0
      %p69 = por %p67, %p68
      %p70 = scmp.ne.s32.totalorder %s56, %s57
      %p71 = scmp.eq.s32.totalorder %s23, 3
      %p72 = por %p70, %p71
      %p74 = scmp.ne.s32.totalorder %s57, %s73
      %p75 = scmp.eq.s32.totalorder %s23, 0
      %p76 = por %p74, %p75
      %s77 = ssub.s32 %s17, %s24
      %p78 = scmp.eq.s32.totalorder %s77, 0
      %s80 = sadd.s32 %s79, 1
      %s81 = scalar_select %p78, %s79, %s80
      %p84 = pneg %p78
      %p85 = scmp.eq.s32.totalorder %s17, 3
      %p86 = por %p84, %p85
      %p87 = scmp.ne.s32.totalorder %s79, %s82
      %p88 = scmp.eq.s32.totalorder %s17, 0
      %p89 = por %p87, %p88
      %p90 = scmp.ne.s32.totalorder %s79, %s82
      %p91 = scmp.eq.s32.totalorder %s22, 3
      %p92 = por %p90, %p91
      %p93 = scmp.ne.s32.totalorder %s82, %s83
      %p94 = scmp.eq.s32.totalorder %s22, 0
      %p95 = por %p93, %p94
      %p96 = scmp.ne.s32.totalorder %s82, %s83
      %p97 = scmp.eq.s32.totalorder %s23, 3
      %p98 = por %p96, %p97
      %p100 = scmp.ne.s32.totalorder %s83, %s99
      %p101 = scmp.eq.s32.totalorder %s23, 0
      %p102 = por %p100, %p101
      %p103 = scmp.le.s32.totalorder 1, %s17
      %p104 = scmp.lt.s32.totalorder %s17, 5
      %p105 = pnand %p103, %p104
      %p106 = pneg %p105
      // Predicated region
      $region9: #{tpu_custom_call.1} parent=5 // pred_check
        _
      $region10: #{tpu_custom_call.1} parent=5 // pred_check_branch
        %108 = sbr.rel (%p105) target = $region12
      $region11: #{tpu_custom_call.1} parent=5 // pred_region
        %s109 = ssub.s32 %s17, 1
      $region12: #{tpu_custom_call.1} parent=5 // pred_fallthru
        _
      %p110 = scmp.lt.s32.totalorder %s17, 4
      // Predicated region
      $region13: #{tpu_custom_call.1} parent=5 // pred_check
        %p111 = pneg %p110
      $region14: #{tpu_custom_call.1} parent=5 // pred_check_branch
        %113 = sbr.rel (%p111) target = $region16
      $region15: #{tpu_custom_call.1} parent=5 // pred_region
        // Predicated region
        $region17: #{tpu_custom_call.1} parent=15 // pred_check
          %p114 = pneg %p37
        $region18: #{tpu_custom_call.1} parent=15 // pred_check_branch
          %116 = sbr.rel (%p114) target = $region20
        $region19: #{tpu_custom_call.1} parent=15 // pred_region
          %s117 = sand.u32 %s27, 1
          %s118 = scalar_lea.sflag [#allocation3], %s117
          %s119 = sand.u32 %s27, 1
          %s120 = smul.addr %s119, 2048
          %s121 = scalar_lea.vmem [#allocation2], %s120
          %s122 = smul.u32 16, %s17
          %s124 = ssub.s32 32768, 32768
          %125 = vsyncadd %s118, %s124
          %s126 = smul.addr %s122, 16
          %s127 = smul.addr %s126, 128
          %s128 = scalar_lea.hbm %s0, %s127
          %s129 = sshll.u32 %s121, 4
          %s130 = int_to_ptr.vmem [resolvable:$true] %s129
          %135 = dma.hbm_to_vmem [thread:$0]  %s128, 32768, %s130, %s118, 2048, 2048, 128
        $region20: #{tpu_custom_call.1} parent=15 // pred_fallthru
          _
        // Predicated region
        $region21: #{tpu_custom_call.1} parent=15 // pred_check
          %p136 = pneg %p63
        $region22: #{tpu_custom_call.1} parent=15 // pred_check_branch
          %138 = sbr.rel (%p136) target = $region24
        $region23: #{tpu_custom_call.1} parent=15 // pred_region
          %s139 = sand.u32 %s53, 1
          %s140 = scalar_lea.sflag [#allocation6], %s139
          %s141 = sand.u32 %s53, 1
          %s142 = smul.addr %s141, 256
          %s143 = scalar_lea.vmem [#allocation5], %s142
          %s144 = smul.u32 16, %s17
          %s146 = ssub.s32 4096, 4096
          %147 = vsyncadd %s140, %s146
          %s148 = smul.addr %s144, 2
          %s149 = smul.addr %s148, 128
          %s150 = scalar_lea.hbm %s1, %s149
          %s151 = sshll.u32 %s143, 4
          %s152 = int_to_ptr.vmem [resolvable:$true] %s151
          %157 = dma.hbm_to_vmem [thread:$0]  %s150, 4096, %s152, %s140, 256, 256, 16
        $region24: #{tpu_custom_call.1} parent=15 // pred_fallthru
          _
      $region16: #{tpu_custom_call.1} parent=5 // pred_fallthru
        _
      %p158 = scmp.le.s32.totalorder 1, %s17
      %p159 = scmp.lt.s32.totalorder %s17, 5
      %p160 = pnand %p158, %p159
      %p161 = pneg %p160
      // Predicated region
      $region25: #{tpu_custom_call.1} parent=5 // pred_check
        _
      $region26: #{tpu_custom_call.1} parent=5 // pred_check_branch
        %163 = sbr.rel (%p160) target = $region28
      $region27: #{tpu_custom_call.1} parent=5 // pred_region
        %s164 = ssub.s32 %s17, 1
        %s165 = sand.u32 %s30, 1
        %s166 = scalar_lea.sflag [#allocation3], %s165
        %s167 = sand.u32 %s30, 1
        %s168 = smul.addr %s167, 2048
        %s169 = scalar_lea.vmem [#allocation2], %s168
        // Predicated region
        $region29: #{tpu_custom_call.1} parent=27 // pred_check
          %p170 = pneg %p43
        $region30: #{tpu_custom_call.1} parent=27 // pred_check_branch
          %172 = sbr.rel (%p170) target = $region32
        $region31: #{tpu_custom_call.1} parent=27 // pred_region
          %173 = dma.done %s166, 32768
        $region32: #{tpu_custom_call.1} parent=27 // pred_fallthru
          _
        %s174 = sand.u32 %s56, 1
        %s175 = scalar_lea.sflag [#allocation6], %s174
        %s176 = sand.u32 %s56, 1
        %s177 = smul.addr %s176, 256
        %s178 = scalar_lea.vmem [#allocation5], %s177
        // Predicated region
        $region33: #{tpu_custom_call.1} parent=27 // pred_check
          %p179 = pneg %p69
        $region34: #{tpu_custom_call.1} parent=27 // pred_check_branch
          %181 = sbr.rel (%p179) target = $region36
        $region35: #{tpu_custom_call.1} parent=27 // pred_region
          %182 = dma.done %s175, 4096
        $region36: #{tpu_custom_call.1} parent=27 // pred_fallthru
          _
        %s183 = sand.u32 %s30, 1
        %s184 = scalar_lea.sflag [#allocation3], %s183
        %s185 = sand.u32 %s30, 1
        %s186 = smul.addr %s185, 2048
        %s187 = scalar_lea.vmem [#allocation2], %s186
        %p188 = pneg %p43
        %p189 = pneg %p40
        %s190 = sand.u32 %s56, 1
        %s191 = scalar_lea.sflag [#allocation6], %s190
        %s192 = sand.u32 %s56, 1
        %s193 = smul.addr %s192, 256
        %s194 = scalar_lea.vmem [#allocation5], %s193
        %p195 = pneg %p69
        %p196 = pneg %p66
        %p197 = pneg %p95
        %p198 = pneg %p92
        %s199 = sand.u32 %s82, 1
        %s200 = scalar_lea.sflag [#allocation4], %s199
        %s201 = sand.u32 %s82, 1
        %s202 = smul.addr %s201, 2048
        %s203 = scalar_lea.vmem [#allocation7], %s202
        %s204 = smul.u32 16, %s22
        %s205 = smul.u32 16, %s22
        %s206 = smul.u32 16, %s22
        %v207 = vld [vmem:[%s178] sm:$0xff]
        %v208 = vld [vmem:[%s178 + $0x8] sm:$0xff]
        %v209 = vld [vmem:[%s178 + $0x10] sm:$0xff]
        %v210 = vld [vmem:[%s178 + $0x18] sm:$0xff]
        %v211 = vld [vmem:[%s178 + $0x20] sm:$0xff]
        %v212 = vld [vmem:[%s178 + $0x28] sm:$0xff]
        %v213 = vld [vmem:[%s178 + $0x30] sm:$0xff]
        %v214 = vld [vmem:[%s178 + $0x38] sm:$0xff]
        %v215 = vld [vmem:[%s178 + $0x40] sm:$0xff]
        %v216 = vld [vmem:[%s178 + $0x48] sm:$0xff]
        %v217 = vld [vmem:[%s178 + $0x50] sm:$0xff]
        %v218 = vld [vmem:[%s178 + $0x58] sm:$0xff]
        %v219 = vld [vmem:[%s178 + $0x60] sm:$0xff]
        %v220 = vld [vmem:[%s178 + $0x68] sm:$0xff]
        %v221 = vld [vmem:[%s178 + $0x70] sm:$0xff]
        %v222 = vld [vmem:[%s178 + $0x78] sm:$0xff]
        %v223 = vld [vmem:[%s178 + $0x80] sm:$0xff]
        %v224 = vld [vmem:[%s178 + $0x88] sm:$0xff]
        %v225 = vld [vmem:[%s178 + $0x90] sm:$0xff]
        %v226 = vld [vmem:[%s178 + $0x98] sm:$0xff]
        %v227 = vld [vmem:[%s178 + $0xa0] sm:$0xff]
        %v228 = vld [vmem:[%s178 + $0xa8] sm:$0xff]
        %v229 = vld [vmem:[%s178 + $0xb0] sm:$0xff]
        %v230 = vld [vmem:[%s178 + $0xb8] sm:$0xff]
        %v231 = vld [vmem:[%s178 + $0xc0] sm:$0xff]
        %v232 = vld [vmem:[%s178 + $0xc8] sm:$0xff]
        %v233 = vld [vmem:[%s178 + $0xd0] sm:$0xff]
        %v234 = vld [vmem:[%s178 + $0xd8] sm:$0xff]
        %v235 = vld [vmem:[%s178 + $0xe0] sm:$0xff]
        %v236 = vld [vmem:[%s178 + $0xe8] sm:$0xff]
        %v237 = vld [vmem:[%s178 + $0xf0] sm:$0xff]
        %v238 = vld [vmem:[%s178 + $0xf8] sm:$0xff]
        %v239 = vld [vmem:[%s169] sm:$0xff]
        %v240 = vld [vmem:[%s169 + $0x8] sm:$0xff]
        %v241 = vld [vmem:[%s169 + $0x10] sm:$0xff]
        %v242 = vld [vmem:[%s169 + $0x18] sm:$0xff]
        %v243 = vld [vmem:[%s169 + $0x20] sm:$0xff]
        %v244 = vld [vmem:[%s169 + $0x28] sm:$0xff]
        %v245 = vld [vmem:[%s169 + $0x30] sm:$0xff]
        %v246 = vld [vmem:[%s169 + $0x38] sm:$0xff]
        %v247 = vld [vmem:[%s169 + $0x40] sm:$0xff]
        %v248 = vld [vmem:[%s169 + $0x48] sm:$0xff]
        %v249 = vld [vmem:[%s169 + $0x50] sm:$0xff]
        %v250 = vld [vmem:[%s169 + $0x58] sm:$0xff]
        %v251 = vld [vmem:[%s169 + $0x60] sm:$0xff]
        %v252 = vld [vmem:[%s169 + $0x68] sm:$0xff]
        %v253 = vld [vmem:[%s169 + $0x70] sm:$0xff]
        %v254 = vld [vmem:[%s169 + $0x78] sm:$0xff]
        %v255 = vld [vmem:[%s169 + $0x80] sm:$0xff]
        %v256 = vld [vmem:[%s169 + $0x88] sm:$0xff]
        %v257 = vld [vmem:[%s169 + $0x90] sm:$0xff]
        %v258 = vld [vmem:[%s169 + $0x98] sm:$0xff]
        %v259 = vld [vmem:[%s169 + $0xa0] sm:$0xff]
        %v260 = vld [vmem:[%s169 + $0xa8] sm:$0xff]
        %v261 = vld [vmem:[%s169 + $0xb0] sm:$0xff]
        %v262 = vld [vmem:[%s169 + $0xb8] sm:$0xff]
        %v263 = vld [vmem:[%s169 + $0xc0] sm:$0xff]
        %v264 = vld [vmem:[%s169 + $0xc8] sm:$0xff]
        %v265 = vld [vmem:[%s169 + $0xd0] sm:$0xff]
        %v266 = vld [vmem:[%s169 + $0xd8] sm:$0xff]
        %v267 = vld [vmem:[%s169 + $0xe0] sm:$0xff]
        %v268 = vld [vmem:[%s169 + $0xe8] sm:$0xff]
        %v269 = vld [vmem:[%s169 + $0xf0] sm:$0xff]
        %v270 = vld [vmem:[%s169 + $0xf8] sm:$0xff]
        %v271 = vld [vmem:[%s169 + $0x100] sm:$0xff]
        %v272 = vld [vmem:[%s169 + $0x108] sm:$0xff]
        %v273 = vld [vmem:[%s169 + $0x110] sm:$0xff]
        %v274 = vld [vmem:[%s169 + $0x118] sm:$0xff]
        %v275 = vld [vmem:[%s169 + $0x120] sm:$0xff]
        %v276 = vld [vmem:[%s169 + $0x128] sm:$0xff]
        %v277 = vld [vmem:[%s169 + $0x130] sm:$0xff]
        %v278 = vld [vmem:[%s169 + $0x138] sm:$0xff]
        %v279 = vld [vmem:[%s169 + $0x140] sm:$0xff]
        %v280 = vld [vmem:[%s169 + $0x148] sm:$0xff]
        %v281 = vld [vmem:[%s169 + $0x150] sm:$0xff]
        %v282 = vld [vmem:[%s169 + $0x158] sm:$0xff]
        %v283 = vld [vmem:[%s169 + $0x160] sm:$0xff]
        %v284 = vld [vmem:[%s169 + $0x168] sm:$0xff]
        %v285 = vld [vmem:[%s169 + $0x170] sm:$0xff]
        %v286 = vld [vmem:[%s169 + $0x178] sm:$0xff]
        %v287 = vld [vmem:[%s169 + $0x180] sm:$0xff]
        %v288 = vld [vmem:[%s169 + $0x188] sm:$0xff]
        %v289 = vld [vmem:[%s169 + $0x190] sm:$0xff]
        %v290 = vld [vmem:[%s169 + $0x198] sm:$0xff]
        %v291 = vld [vmem:[%s169 + $0x1a0] sm:$0xff]
        %v292 = vld [vmem:[%s169 + $0x1a8] sm:$0xff]
        %v293 = vld [vmem:[%s169 + $0x1b0] sm:$0xff]
        %v294 = vld [vmem:[%s169 + $0x1b8] sm:$0xff]
        %v295 = vld [vmem:[%s169 + $0x1c0] sm:$0xff]
        %v296 = vld [vmem:[%s169 + $0x1c8] sm:$0xff]
        %v297 = vld [vmem:[%s169 + $0x1d0] sm:$0xff]
        %v298 = vld [vmem:[%s169 + $0x1d8] sm:$0xff]
        %v299 = vld [vmem:[%s169 + $0x1e0] sm:$0xff]
        %v300 = vld [vmem:[%s169 + $0x1e8] sm:$0xff]
        %v301 = vld [vmem:[%s169 + $0x1f0] sm:$0xff]
        %v302 = vld [vmem:[%s169 + $0x1f8] sm:$0xff]
        %v303 = vld [vmem:[%s169 + $0x200] sm:$0xff]
        %v304 = vld [vmem:[%s169 + $0x208] sm:$0xff]
        %v305 = vld [vmem:[%s169 + $0x210] sm:$0xff]
        %v306 = vld [vmem:[%s169 + $0x218] sm:$0xff]
        %v307 = vld [vmem:[%s169 + $0x220] sm:$0xff]
        %v308 = vld [vmem:[%s169 + $0x228] sm:$0xff]
        %v309 = vld [vmem:[%s169 + $0x230] sm:$0xff]
        %v310 = vld [vmem:[%s169 + $0x238] sm:$0xff]
        %v311 = vld [vmem:[%s169 + $0x240] sm:$0xff]
        %v312 = vld [vmem:[%s169 + $0x248] sm:$0xff]
        %v313 = vld [vmem:[%s169 + $0x250] sm:$0xff]
        %v314 = vld [vmem:[%s169 + $0x258] sm:$0xff]
        %v315 = vld [vmem:[%s169 + $0x260] sm:$0xff]
        %v316 = vld [vmem:[%s169 + $0x268] sm:$0xff]
        %v317 = vld [vmem:[%s169 + $0x270] sm:$0xff]
        %v318 = vld [vmem:[%s169 + $0x278] sm:$0xff]
        %v319 = vld [vmem:[%s169 + $0x280] sm:$0xff]
        %v320 = vld [vmem:[%s169 + $0x288] sm:$0xff]
        %v321 = vld [vmem:[%s169 + $0x290] sm:$0xff]
        %v322 = vld [vmem:[%s169 + $0x298] sm:$0xff]
        %v323 = vld [vmem:[%s169 + $0x2a0] sm:$0xff]
        %v324 = vld [vmem:[%s169 + $0x2a8] sm:$0xff]
        %v325 = vld [vmem:[%s169 + $0x2b0] sm:$0xff]
        %v326 = vld [vmem:[%s169 + $0x2b8] sm:$0xff]
        %v327 = vld [vmem:[%s169 + $0x2c0] sm:$0xff]
        %v328 = vld [vmem:[%s169 + $0x2c8] sm:$0xff]
        %v329 = vld [vmem:[%s169 + $0x2d0] sm:$0xff]
        %v330 = vld [vmem:[%s169 + $0x2d8] sm:$0xff]
        %v331 = vld [vmem:[%s169 + $0x2e0] sm:$0xff]
        %v332 = vld [vmem:[%s169 + $0x2e8] sm:$0xff]
        %v333 = vld [vmem:[%s169 + $0x2f0] sm:$0xff]
        %v334 = vld [vmem:[%s169 + $0x2f8] sm:$0xff]
        %v335 = vld [vmem:[%s169 + $0x300] sm:$0xff]
        %v336 = vld [vmem:[%s169 + $0x308] sm:$0xff]
        %v337 = vld [vmem:[%s169 + $0x310] sm:$0xff]
        %v338 = vld [vmem:[%s169 + $0x318] sm:$0xff]
        %v339 = vld [vmem:[%s169 + $0x320] sm:$0xff]
        %v340 = vld [vmem:[%s169 + $0x328] sm:$0xff]
        %v341 = vld [vmem:[%s169 + $0x330] sm:$0xff]
        %v342 = vld [vmem:[%s169 + $0x338] sm:$0xff]
        %v343 = vld [vmem:[%s169 + $0x340] sm:$0xff]
        %v344 = vld [vmem:[%s169 + $0x348] sm:$0xff]
        %v345 = vld [vmem:[%s169 + $0x350] sm:$0xff]
        %v346 = vld [vmem:[%s169 + $0x358] sm:$0xff]
        %v347 = vld [vmem:[%s169 + $0x360] sm:$0xff]
        %v348 = vld [vmem:[%s169 + $0x368] sm:$0xff]
        %v349 = vld [vmem:[%s169 + $0x370] sm:$0xff]
        %v350 = vld [vmem:[%s169 + $0x378] sm:$0xff]
        %v351 = vld [vmem:[%s169 + $0x380] sm:$0xff]
        %v352 = vld [vmem:[%s169 + $0x388] sm:$0xff]
        %v353 = vld [vmem:[%s169 + $0x390] sm:$0xff]
        %v354 = vld [vmem:[%s169 + $0x398] sm:$0xff]
        %v355 = vld [vmem:[%s169 + $0x3a0] sm:$0xff]
        %v356 = vld [vmem:[%s169 + $0x3a8] sm:$0xff]
        %v357 = vld [vmem:[%s169 + $0x3b0] sm:$0xff]
        %v358 = vld [vmem:[%s169 + $0x3b8] sm:$0xff]
        %v359 = vld [vmem:[%s169 + $0x3c0] sm:$0xff]
        %v360 = vld [vmem:[%s169 + $0x3c8] sm:$0xff]
        %v361 = vld [vmem:[%s169 + $0x3d0] sm:$0xff]
        %v362 = vld [vmem:[%s169 + $0x3d8] sm:$0xff]
        %v363 = vld [vmem:[%s169 + $0x3e0] sm:$0xff]
        %v364 = vld [vmem:[%s169 + $0x3e8] sm:$0xff]
        %v365 = vld [vmem:[%s169 + $0x3f0] sm:$0xff]
        %v366 = vld [vmem:[%s169 + $0x3f8] sm:$0xff]
        %v367 = vld [vmem:[%s169 + $0x400] sm:$0xff]
        %v368 = vld [vmem:[%s169 + $0x408] sm:$0xff]
        %v369 = vld [vmem:[%s169 + $0x410] sm:$0xff]
        %v370 = vld [vmem:[%s169 + $0x418] sm:$0xff]
        %v371 = vld [vmem:[%s169 + $0x420] sm:$0xff]
        %v372 = vld [vmem:[%s169 + $0x428] sm:$0xff]
        %v373 = vld [vmem:[%s169 + $0x430] sm:$0xff]
        %v374 = vld [vmem:[%s169 + $0x438] sm:$0xff]
        %v375 = vld [vmem:[%s169 + $0x440] sm:$0xff]
        %v376 = vld [vmem:[%s169 + $0x448] sm:$0xff]
        %v377 = vld [vmem:[%s169 + $0x450] sm:$0xff]
        %v378 = vld [vmem:[%s169 + $0x458] sm:$0xff]
        %v379 = vld [vmem:[%s169 + $0x460] sm:$0xff]
        %v380 = vld [vmem:[%s169 + $0x468] sm:$0xff]
        %v381 = vld [vmem:[%s169 + $0x470] sm:$0xff]
        %v382 = vld [vmem:[%s169 + $0x478] sm:$0xff]
        %v383 = vld [vmem:[%s169 + $0x480] sm:$0xff]
        %v384 = vld [vmem:[%s169 + $0x488] sm:$0xff]
        %v385 = vld [vmem:[%s169 + $0x490] sm:$0xff]
        %v386 = vld [vmem:[%s169 + $0x498] sm:$0xff]
        %v387 = vld [vmem:[%s169 + $0x4a0] sm:$0xff]
        %v388 = vld [vmem:[%s169 + $0x4a8] sm:$0xff]
        %v389 = vld [vmem:[%s169 + $0x4b0] sm:$0xff]
        %v390 = vld [vmem:[%s169 + $0x4b8] sm:$0xff]
        %v391 = vld [vmem:[%s169 + $0x4c0] sm:$0xff]
        %v392 = vld [vmem:[%s169 + $0x4c8] sm:$0xff]
        %v393 = vld [vmem:[%s169 + $0x4d0] sm:$0xff]
        %v394 = vld [vmem:[%s169 + $0x4d8] sm:$0xff]
        %v395 = vld [vmem:[%s169 + $0x4e0] sm:$0xff]
        %v396 = vld [vmem:[%s169 + $0x4e8] sm:$0xff]
        %v397 = vld [vmem:[%s169 + $0x4f0] sm:$0xff]
        %v398 = vld [vmem:[%s169 + $0x4f8] sm:$0xff]
        %v399 = vld [vmem:[%s169 + $0x500] sm:$0xff]
        %v400 = vld [vmem:[%s169 + $0x508] sm:$0xff]
        %v401 = vld [vmem:[%s169 + $0x510] sm:$0xff]
        %v402 = vld [vmem:[%s169 + $0x518] sm:$0xff]
        %v403 = vld [vmem:[%s169 + $0x520] sm:$0xff]
        %v404 = vld [vmem:[%s169 + $0x528] sm:$0xff]
        %v405 = vld [vmem:[%s169 + $0x530] sm:$0xff]
        %v406 = vld [vmem:[%s169 + $0x538] sm:$0xff]
        %v407 = vld [vmem:[%s169 + $0x540] sm:$0xff]
        %v408 = vld [vmem:[%s169 + $0x548] sm:$0xff]
        %v409 = vld [vmem:[%s169 + $0x550] sm:$0xff]
        %v410 = vld [vmem:[%s169 + $0x558] sm:$0xff]
        %v411 = vld [vmem:[%s169 + $0x560] sm:$0xff]
        %v412 = vld [vmem:[%s169 + $0x568] sm:$0xff]
        %v413 = vld [vmem:[%s169 + $0x570] sm:$0xff]
        %v414 = vld [vmem:[%s169 + $0x578] sm:$0xff]
        %v415 = vld [vmem:[%s169 + $0x580] sm:$0xff]
        %v416 = vld [vmem:[%s169 + $0x588] sm:$0xff]
        %v417 = vld [vmem:[%s169 + $0x590] sm:$0xff]
        %v418 = vld [vmem:[%s169 + $0x598] sm:$0xff]
        %v419 = vld [vmem:[%s169 + $0x5a0] sm:$0xff]
        %v420 = vld [vmem:[%s169 + $0x5a8] sm:$0xff]
        %v421 = vld [vmem:[%s169 + $0x5b0] sm:$0xff]
        %v422 = vld [vmem:[%s169 + $0x5b8] sm:$0xff]
        %v423 = vld [vmem:[%s169 + $0x5c0] sm:$0xff]
        %v424 = vld [vmem:[%s169 + $0x5c8] sm:$0xff]
        %v425 = vld [vmem:[%s169 + $0x5d0] sm:$0xff]
        %v426 = vld [vmem:[%s169 + $0x5d8] sm:$0xff]
        %v427 = vld [vmem:[%s169 + $0x5e0] sm:$0xff]
        %v428 = vld [vmem:[%s169 + $0x5e8] sm:$0xff]
        %v429 = vld [vmem:[%s169 + $0x5f0] sm:$0xff]
        %v430 = vld [vmem:[%s169 + $0x5f8] sm:$0xff]
        %v431 = vld [vmem:[%s169 + $0x600] sm:$0xff]
        %v432 = vld [vmem:[%s169 + $0x608] sm:$0xff]
        %v433 = vld [vmem:[%s169 + $0x610] sm:$0xff]
        %v434 = vld [vmem:[%s169 + $0x618] sm:$0xff]
        %v435 = vld [vmem:[%s169 + $0x620] sm:$0xff]
        %v436 = vld [vmem:[%s169 + $0x628] sm:$0xff]
        %v437 = vld [vmem:[%s169 + $0x630] sm:$0xff]
        %v438 = vld [vmem:[%s169 + $0x638] sm:$0xff]
        %v439 = vld [vmem:[%s169 + $0x640] sm:$0xff]
        %v440 = vld [vmem:[%s169 + $0x648] sm:$0xff]
        %v441 = vld [vmem:[%s169 + $0x650] sm:$0xff]
        %v442 = vld [vmem:[%s169 + $0x658] sm:$0xff]
        %v443 = vld [vmem:[%s169 + $0x660] sm:$0xff]
        %v444 = vld [vmem:[%s169 + $0x668] sm:$0xff]
        %v445 = vld [vmem:[%s169 + $0x670] sm:$0xff]
        %v446 = vld [vmem:[%s169 + $0x678] sm:$0xff]
        %v447 = vld [vmem:[%s169 + $0x680] sm:$0xff]
        %v448 = vld [vmem:[%s169 + $0x688] sm:$0xff]
        %v449 = vld [vmem:[%s169 + $0x690] sm:$0xff]
        %v450 = vld [vmem:[%s169 + $0x698] sm:$0xff]
        %v451 = vld [vmem:[%s169 + $0x6a0] sm:$0xff]
        %v452 = vld [vmem:[%s169 + $0x6a8] sm:$0xff]
        %v453 = vld [vmem:[%s169 + $0x6b0] sm:$0xff]
        %v454 = vld [vmem:[%s169 + $0x6b8] sm:$0xff]
        %v455 = vld [vmem:[%s169 + $0x6c0] sm:$0xff]
        %v456 = vld [vmem:[%s169 + $0x6c8] sm:$0xff]
        %v457 = vld [vmem:[%s169 + $0x6d0] sm:$0xff]
        %v458 = vld [vmem:[%s169 + $0x6d8] sm:$0xff]
        %v459 = vld [vmem:[%s169 + $0x6e0] sm:$0xff]
        %v460 = vld [vmem:[%s169 + $0x6e8] sm:$0xff]
        %v461 = vld [vmem:[%s169 + $0x6f0] sm:$0xff]
        %v462 = vld [vmem:[%s169 + $0x6f8] sm:$0xff]
        %v463 = vld [vmem:[%s169 + $0x700] sm:$0xff]
        %v464 = vld [vmem:[%s169 + $0x708] sm:$0xff]
        %v465 = vld [vmem:[%s169 + $0x710] sm:$0xff]
        %v466 = vld [vmem:[%s169 + $0x718] sm:$0xff]
        %v467 = vld [vmem:[%s169 + $0x720] sm:$0xff]
        %v468 = vld [vmem:[%s169 + $0x728] sm:$0xff]
        %v469 = vld [vmem:[%s169 + $0x730] sm:$0xff]
        %v470 = vld [vmem:[%s169 + $0x738] sm:$0xff]
        %v471 = vld [vmem:[%s169 + $0x740] sm:$0xff]
        %v472 = vld [vmem:[%s169 + $0x748] sm:$0xff]
        %v473 = vld [vmem:[%s169 + $0x750] sm:$0xff]
        %v474 = vld [vmem:[%s169 + $0x758] sm:$0xff]
        %v475 = vld [vmem:[%s169 + $0x760] sm:$0xff]
        %v476 = vld [vmem:[%s169 + $0x768] sm:$0xff]
        %v477 = vld [vmem:[%s169 + $0x770] sm:$0xff]
        %v478 = vld [vmem:[%s169 + $0x778] sm:$0xff]
        %v479 = vld [vmem:[%s169 + $0x780] sm:$0xff]
        %v480 = vld [vmem:[%s169 + $0x788] sm:$0xff]
        %v481 = vld [vmem:[%s169 + $0x790] sm:$0xff]
        %v482 = vld [vmem:[%s169 + $0x798] sm:$0xff]
        %v483 = vld [vmem:[%s169 + $0x7a0] sm:$0xff]
        %v484 = vld [vmem:[%s169 + $0x7a8] sm:$0xff]
        %v485 = vld [vmem:[%s169 + $0x7b0] sm:$0xff]
        %v486 = vld [vmem:[%s169 + $0x7b8] sm:$0xff]
        %v487 = vld [vmem:[%s169 + $0x7c0] sm:$0xff]
        %v488 = vld [vmem:[%s169 + $0x7c8] sm:$0xff]
        %v489 = vld [vmem:[%s169 + $0x7d0] sm:$0xff]
        %v490 = vld [vmem:[%s169 + $0x7d8] sm:$0xff]
        %v491 = vld [vmem:[%s169 + $0x7e0] sm:$0xff]
        %v492 = vld [vmem:[%s169 + $0x7e8] sm:$0xff]
        %v493 = vld [vmem:[%s169 + $0x7f0] sm:$0xff]
        %v494 = vld [vmem:[%s169 + $0x7f8] sm:$0xff]
        %v495 = vadd.f32 %v239, %v207
        %v496 = vadd.f32 %v240, %v208
        %v497 = vadd.f32 %v241, %v207
        %v498 = vadd.f32 %v242, %v208
        %v499 = vadd.f32 %v243, %v207
        %v500 = vadd.f32 %v244, %v208
        %v501 = vadd.f32 %v245, %v207
        %v502 = vadd.f32 %v246, %v208
        %v503 = vadd.f32 %v247, %v207
        %v504 = vadd.f32 %v248, %v208
        %v505 = vadd.f32 %v249, %v207
        %v506 = vadd.f32 %v250, %v208
        %v507 = vadd.f32 %v251, %v207
        %v508 = vadd.f32 %v252, %v208
        %v509 = vadd.f32 %v253, %v207
        %v510 = vadd.f32 %v254, %v208
        %v511 = vadd.f32 %v255, %v209
        %v512 = vadd.f32 %v256, %v210
        %v513 = vadd.f32 %v257, %v209
        %v514 = vadd.f32 %v258, %v210
        %v515 = vadd.f32 %v259, %v209
        %v516 = vadd.f32 %v260, %v210
        %v517 = vadd.f32 %v261, %v209
        %v518 = vadd.f32 %v262, %v210
        %v519 = vadd.f32 %v263, %v209
        %v520 = vadd.f32 %v264, %v210
        %v521 = vadd.f32 %v265, %v209
        %v522 = vadd.f32 %v266, %v210
        %v523 = vadd.f32 %v267, %v209
        %v524 = vadd.f32 %v268, %v210
        %v525 = vadd.f32 %v269, %v209
        %v526 = vadd.f32 %v270, %v210
        %v527 = vadd.f32 %v271, %v211
        %v528 = vadd.f32 %v272, %v212
        %v529 = vadd.f32 %v273, %v211
        %v530 = vadd.f32 %v274, %v212
        %v531 = vadd.f32 %v275, %v211
        %v532 = vadd.f32 %v276, %v212
        %v533 = vadd.f32 %v277, %v211
        %v534 = vadd.f32 %v278, %v212
        %v535 = vadd.f32 %v279, %v211
        %v536 = vadd.f32 %v280, %v212
        %v537 = vadd.f32 %v281, %v211
        %v538 = vadd.f32 %v282, %v212
        %v539 = vadd.f32 %v283, %v211
        %v540 = vadd.f32 %v284, %v212
        %v541 = vadd.f32 %v285, %v211
        %v542 = vadd.f32 %v286, %v212
        %v543 = vadd.f32 %v287, %v213
        %v544 = vadd.f32 %v288, %v214
        %v545 = vadd.f32 %v289, %v213
        %v546 = vadd.f32 %v290, %v214
        %v547 = vadd.f32 %v291, %v213
        %v548 = vadd.f32 %v292, %v214
        %v549 = vadd.f32 %v293, %v213
        %v550 = vadd.f32 %v294, %v214
        %v551 = vadd.f32 %v295, %v213
        %v552 = vadd.f32 %v296, %v214
        %v553 = vadd.f32 %v297, %v213
        %v554 = vadd.f32 %v298, %v214
        %v555 = vadd.f32 %v299, %v213
        %v556 = vadd.f32 %v300, %v214
        %v557 = vadd.f32 %v301, %v213
        %v558 = vadd.f32 %v302, %v214
        %v559 = vadd.f32 %v303, %v215
        %v560 = vadd.f32 %v304, %v216
        %v561 = vadd.f32 %v305, %v215
        %v562 = vadd.f32 %v306, %v216
        %v563 = vadd.f32 %v307, %v215
        %v564 = vadd.f32 %v308, %v216
        %v565 = vadd.f32 %v309, %v215
        %v566 = vadd.f32 %v310, %v216
        %v567 = vadd.f32 %v311, %v215
        %v568 = vadd.f32 %v312, %v216
        %v569 = vadd.f32 %v313, %v215
        %v570 = vadd.f32 %v314, %v216
        %v571 = vadd.f32 %v315, %v215
        %v572 = vadd.f32 %v316, %v216
        %v573 = vadd.f32 %v317, %v215
        %v574 = vadd.f32 %v318, %v216
        %v575 = vadd.f32 %v319, %v217
        %v576 = vadd.f32 %v320, %v218
        %v577 = vadd.f32 %v321, %v217
        %v578 = vadd.f32 %v322, %v218
        %v579 = vadd.f32 %v323, %v217
        %v580 = vadd.f32 %v324, %v218
        %v581 = vadd.f32 %v325, %v217
        %v582 = vadd.f32 %v326, %v218
        %v583 = vadd.f32 %v327, %v217
        %v584 = vadd.f32 %v328, %v218
        %v585 = vadd.f32 %v329, %v217
        %v586 = vadd.f32 %v330, %v218
        %v587 = vadd.f32 %v331, %v217
        %v588 = vadd.f32 %v332, %v218
        %v589 = vadd.f32 %v333, %v217
        %v590 = vadd.f32 %v334, %v218
        %v591 = vadd.f32 %v335, %v219
        %v592 = vadd.f32 %v336, %v220
        %v593 = vadd.f32 %v337, %v219
        %v594 = vadd.f32 %v338, %v220
        %v595 = vadd.f32 %v339, %v219
        %v596 = vadd.f32 %v340, %v220
        %v597 = vadd.f32 %v341, %v219
        %v598 = vadd.f32 %v342, %v220
        %v599 = vadd.f32 %v343, %v219
        %v600 = vadd.f32 %v344, %v220
        %v601 = vadd.f32 %v345, %v219
        %v602 = vadd.f32 %v346, %v220
        %v603 = vadd.f32 %v347, %v219
        %v604 = vadd.f32 %v348, %v220
        %v605 = vadd.f32 %v349, %v219
        %v606 = vadd.f32 %v350, %v220
        %v607 = vadd.f32 %v351, %v221
        %v608 = vadd.f32 %v352, %v222
        %v609 = vadd.f32 %v353, %v221
        %v610 = vadd.f32 %v354, %v222
        %v611 = vadd.f32 %v355, %v221
        %v612 = vadd.f32 %v356, %v222
        %v613 = vadd.f32 %v357, %v221
        %v614 = vadd.f32 %v358, %v222
        %v615 = vadd.f32 %v359, %v221
        %v616 = vadd.f32 %v360, %v222
        %v617 = vadd.f32 %v361, %v221
        %v618 = vadd.f32 %v362, %v222
        %v619 = vadd.f32 %v363, %v221
        %v620 = vadd.f32 %v364, %v222
        %v621 = vadd.f32 %v365, %v221
        %v622 = vadd.f32 %v366, %v222
        %v623 = vadd.f32 %v367, %v223
        %v624 = vadd.f32 %v368, %v224
        %v625 = vadd.f32 %v369, %v223
        %v626 = vadd.f32 %v370, %v224
        %v627 = vadd.f32 %v371, %v223
        %v628 = vadd.f32 %v372, %v224
        %v629 = vadd.f32 %v373, %v223
        %v630 = vadd.f32 %v374, %v224
        %v631 = vadd.f32 %v375, %v223
        %v632 = vadd.f32 %v376, %v224
        %v633 = vadd.f32 %v377, %v223
        %v634 = vadd.f32 %v378, %v224
        %v635 = vadd.f32 %v379, %v223
        %v636 = vadd.f32 %v380, %v224
        %v637 = vadd.f32 %v381, %v223
        %v638 = vadd.f32 %v382, %v224
        %v639 = vadd.f32 %v383, %v225
        %v640 = vadd.f32 %v384, %v226
        %v641 = vadd.f32 %v385, %v225
        %v642 = vadd.f32 %v386, %v226
        %v643 = vadd.f32 %v387, %v225
        %v644 = vadd.f32 %v388, %v226
        %v645 = vadd.f32 %v389, %v225
        %v646 = vadd.f32 %v390, %v226
        %v647 = vadd.f32 %v391, %v225
        %v648 = vadd.f32 %v392, %v226
        %v649 = vadd.f32 %v393, %v225
        %v650 = vadd.f32 %v394, %v226
        %v651 = vadd.f32 %v395, %v225
        %v652 = vadd.f32 %v396, %v226
        %v653 = vadd.f32 %v397, %v225
        %v654 = vadd.f32 %v398, %v226
        %v655 = vadd.f32 %v399, %v227
        %v656 = vadd.f32 %v400, %v228
        %v657 = vadd.f32 %v401, %v227
        %v658 = vadd.f32 %v402, %v228
        %v659 = vadd.f32 %v403, %v227
        %v660 = vadd.f32 %v404, %v228
        %v661 = vadd.f32 %v405, %v227
        %v662 = vadd.f32 %v406, %v228
        %v663 = vadd.f32 %v407, %v227
        %v664 = vadd.f32 %v408, %v228
        %v665 = vadd.f32 %v409, %v227
        %v666 = vadd.f32 %v410, %v228
        %v667 = vadd.f32 %v411, %v227
        %v668 = vadd.f32 %v412, %v228
        %v669 = vadd.f32 %v413, %v227
        %v670 = vadd.f32 %v414, %v228
        %v671 = vadd.f32 %v415, %v229
        %v672 = vadd.f32 %v416, %v230
        %v673 = vadd.f32 %v417, %v229
        %v674 = vadd.f32 %v418, %v230
        %v675 = vadd.f32 %v419, %v229
        %v676 = vadd.f32 %v420, %v230
        %v677 = vadd.f32 %v421, %v229
        %v678 = vadd.f32 %v422, %v230
        %v679 = vadd.f32 %v423, %v229
        %v680 = vadd.f32 %v424, %v230
        %v681 = vadd.f32 %v425, %v229
        %v682 = vadd.f32 %v426, %v230
        %v683 = vadd.f32 %v427, %v229
        %v684 = vadd.f32 %v428, %v230
        %v685 = vadd.f32 %v429, %v229
        %v686 = vadd.f32 %v430, %v230
        %v687 = vadd.f32 %v431, %v231
        %v688 = vadd.f32 %v432, %v232
        %v689 = vadd.f32 %v433, %v231
        %v690 = vadd.f32 %v434, %v232
        %v691 = vadd.f32 %v435, %v231
        %v692 = vadd.f32 %v436, %v232
        %v693 = vadd.f32 %v437, %v231
        %v694 = vadd.f32 %v438, %v232
        %v695 = vadd.f32 %v439, %v231
        %v696 = vadd.f32 %v440, %v232
        %v697 = vadd.f32 %v441, %v231
        %v698 = vadd.f32 %v442, %v232
        %v699 = vadd.f32 %v443, %v231
        %v700 = vadd.f32 %v444, %v232
        %v701 = vadd.f32 %v445, %v231
        %v702 = vadd.f32 %v446, %v232
        %v703 = vadd.f32 %v447, %v233
        %v704 = vadd.f32 %v448, %v234
        %v705 = vadd.f32 %v449, %v233
        %v706 = vadd.f32 %v450, %v234
        %v707 = vadd.f32 %v451, %v233
        %v708 = vadd.f32 %v452, %v234
        %v709 = vadd.f32 %v453, %v233
        %v710 = vadd.f32 %v454, %v234
        %v711 = vadd.f32 %v455, %v233
        %v712 = vadd.f32 %v456, %v234
        %v713 = vadd.f32 %v457, %v233
        %v714 = vadd.f32 %v458, %v234
        %v715 = vadd.f32 %v459, %v233
        %v716 = vadd.f32 %v460, %v234
        %v717 = vadd.f32 %v461, %v233
        %v718 = vadd.f32 %v462, %v234
        %v719 = vadd.f32 %v463, %v235
        %v720 = vadd.f32 %v464, %v236
        %v721 = vadd.f32 %v465, %v235
        %v722 = vadd.f32 %v466, %v236
        %v723 = vadd.f32 %v467, %v235
        %v724 = vadd.f32 %v468, %v236
        %v725 = vadd.f32 %v469, %v235
        %v726 = vadd.f32 %v470, %v236
        %v727 = vadd.f32 %v471, %v235
        %v728 = vadd.f32 %v472, %v236
        %v729 = vadd.f32 %v473, %v235
        %v730 = vadd.f32 %v474, %v236
        %v731 = vadd.f32 %v475, %v235
        %v732 = vadd.f32 %v476, %v236
        %v733 = vadd.f32 %v477, %v235
        %v734 = vadd.f32 %v478, %v236
        %v735 = vadd.f32 %v479, %v237
        %v736 = vadd.f32 %v480, %v238
        %v737 = vadd.f32 %v481, %v237
        %v738 = vadd.f32 %v482, %v238
        %v739 = vadd.f32 %v483, %v237
        %v740 = vadd.f32 %v484, %v238
        %v741 = vadd.f32 %v485, %v237
        %v742 = vadd.f32 %v486, %v238
        %v743 = vadd.f32 %v487, %v237
        %v744 = vadd.f32 %v488, %v238
        %v745 = vadd.f32 %v489, %v237
        %v746 = vadd.f32 %v490, %v238
        %v747 = vadd.f32 %v491, %v237
        %v748 = vadd.f32 %v492, %v238
        %v749 = vadd.f32 %v493, %v237
        %v750 = vadd.f32 %v494, %v238
        %751 = vst [vmem:[%s203] sm:$0xff] %v495
        %752 = vst [vmem:[%s203 + $0x8] sm:$0xff] %v496
        %753 = vst [vmem:[%s203 + $0x10] sm:$0xff] %v497
        %754 = vst [vmem:[%s203 + $0x18] sm:$0xff] %v498
        %755 = vst [vmem:[%s203 + $0x20] sm:$0xff] %v499
        %756 = vst [vmem:[%s203 + $0x28] sm:$0xff] %v500
        %757 = vst [vmem:[%s203 + $0x30] sm:$0xff] %v501
        %758 = vst [vmem:[%s203 + $0x38] sm:$0xff] %v502
        %759 = vst [vmem:[%s203 + $0x40] sm:$0xff] %v503
        %760 = vst [vmem:[%s203 + $0x48] sm:$0xff] %v504
        %761 = vst [vmem:[%s203 + $0x50] sm:$0xff] %v505
        %762 = vst [vmem:[%s203 + $0x58] sm:$0xff] %v506
        %763 = vst [vmem:[%s203 + $0x60] sm:$0xff] %v507
        %764 = vst [vmem:[%s203 + $0x68] sm:$0xff] %v508
        %765 = vst [vmem:[%s203 + $0x70] sm:$0xff] %v509
        %766 = vst [vmem:[%s203 + $0x78] sm:$0xff] %v510
        %767 = vst [vmem:[%s203 + $0x80] sm:$0xff] %v511
        %768 = vst [vmem:[%s203 + $0x88] sm:$0xff] %v512
        %769 = vst [vmem:[%s203 + $0x90] sm:$0xff] %v513
        %770 = vst [vmem:[%s203 + $0x98] sm:$0xff] %v514
        %771 = vst [vmem:[%s203 + $0xa0] sm:$0xff] %v515
        %772 = vst [vmem:[%s203 + $0xa8] sm:$0xff] %v516
        %773 = vst [vmem:[%s203 + $0xb0] sm:$0xff] %v517
        %774 = vst [vmem:[%s203 + $0xb8] sm:$0xff] %v518
        %775 = vst [vmem:[%s203 + $0xc0] sm:$0xff] %v519
        %776 = vst [vmem:[%s203 + $0xc8] sm:$0xff] %v520
        %777 = vst [vmem:[%s203 + $0xd0] sm:$0xff] %v521
        %778 = vst [vmem:[%s203 + $0xd8] sm:$0xff] %v522
        %779 = vst [vmem:[%s203 + $0xe0] sm:$0xff] %v523
        %780 = vst [vmem:[%s203 + $0xe8] sm:$0xff] %v524
        %781 = vst [vmem:[%s203 + $0xf0] sm:$0xff] %v525
        %782 = vst [vmem:[%s203 + $0xf8] sm:$0xff] %v526
        %783 = vst [vmem:[%s203 + $0x100] sm:$0xff] %v527
        %784 = vst [vmem:[%s203 + $0x108] sm:$0xff] %v528
        %785 = vst [vmem:[%s203 + $0x110] sm:$0xff] %v529
        %786 = vst [vmem:[%s203 + $0x118] sm:$0xff] %v530
        %787 = vst [vmem:[%s203 + $0x120] sm:$0xff] %v531
        %788 = vst [vmem:[%s203 + $0x128] sm:$0xff] %v532
        %789 = vst [vmem:[%s203 + $0x130] sm:$0xff] %v533
        %790 = vst [vmem:[%s203 + $0x138] sm:$0xff] %v534
        %791 = vst [vmem:[%s203 + $0x140] sm:$0xff] %v535
        %792 = vst [vmem:[%s203 + $0x148] sm:$0xff] %v536
        %793 = vst [vmem:[%s203 + $0x150] sm:$0xff] %v537
        %794 = vst [vmem:[%s203 + $0x158] sm:$0xff] %v538
        %795 = vst [vmem:[%s203 + $0x160] sm:$0xff] %v539
        %796 = vst [vmem:[%s203 + $0x168] sm:$0xff] %v540
        %797 = vst [vmem:[%s203 + $0x170] sm:$0xff] %v541
        %798 = vst [vmem:[%s203 + $0x178] sm:$0xff] %v542
        %799 = vst [vmem:[%s203 + $0x180] sm:$0xff] %v543
        %800 = vst [vmem:[%s203 + $0x188] sm:$0xff] %v544
        %801 = vst [vmem:[%s203 + $0x190] sm:$0xff] %v545
        %802 = vst [vmem:[%s203 + $0x198] sm:$0xff] %v546
        %803 = vst [vmem:[%s203 + $0x1a0] sm:$0xff] %v547
        %804 = vst [vmem:[%s203 + $0x1a8] sm:$0xff] %v548
        %805 = vst [vmem:[%s203 + $0x1b0] sm:$0xff] %v549
        %806 = vst [vmem:[%s203 + $0x1b8] sm:$0xff] %v550
        %807 = vst [vmem:[%s203 + $0x1c0] sm:$0xff] %v551
        %808 = vst [vmem:[%s203 + $0x1c8] sm:$0xff] %v552
        %809 = vst [vmem:[%s203 + $0x1d0] sm:$0xff] %v553
        %810 = vst [vmem:[%s203 + $0x1d8] sm:$0xff] %v554
        %811 = vst [vmem:[%s203 + $0x1e0] sm:$0xff] %v555
        %812 = vst [vmem:[%s203 + $0x1e8] sm:$0xff] %v556
        %813 = vst [vmem:[%s203 + $0x1f0] sm:$0xff] %v557
        %814 = vst [vmem:[%s203 + $0x1f8] sm:$0xff] %v558
        %815 = vst [vmem:[%s203 + $0x200] sm:$0xff] %v559
        %816 = vst [vmem:[%s203 + $0x208] sm:$0xff] %v560
        %817 = vst [vmem:[%s203 + $0x210] sm:$0xff] %v561
        %818 = vst [vmem:[%s203 + $0x218] sm:$0xff] %v562
        %819 = vst [vmem:[%s203 + $0x220] sm:$0xff] %v563
        %820 = vst [vmem:[%s203 + $0x228] sm:$0xff] %v564
        %821 = vst [vmem:[%s203 + $0x230] sm:$0xff] %v565
        %822 = vst [vmem:[%s203 + $0x238] sm:$0xff] %v566
        %823 = vst [vmem:[%s203 + $0x240] sm:$0xff] %v567
        %824 = vst [vmem:[%s203 + $0x248] sm:$0xff] %v568
        %825 = vst [vmem:[%s203 + $0x250] sm:$0xff] %v569
        %826 = vst [vmem:[%s203 + $0x258] sm:$0xff] %v570
        %827 = vst [vmem:[%s203 + $0x260] sm:$0xff] %v571
        %828 = vst [vmem:[%s203 + $0x268] sm:$0xff] %v572
        %829 = vst [vmem:[%s203 + $0x270] sm:$0xff] %v573
        %830 = vst [vmem:[%s203 + $0x278] sm:$0xff] %v574
        %831 = vst [vmem:[%s203 + $0x280] sm:$0xff] %v575
        %832 = vst [vmem:[%s203 + $0x288] sm:$0xff] %v576
        %833 = vst [vmem:[%s203 + $0x290] sm:$0xff] %v577
        %834 = vst [vmem:[%s203 + $0x298] sm:$0xff] %v578
        %835 = vst [vmem:[%s203 + $0x2a0] sm:$0xff] %v579
        %836 = vst [vmem:[%s203 + $0x2a8] sm:$0xff] %v580
        %837 = vst [vmem:[%s203 + $0x2b0] sm:$0xff] %v581
        %838 = vst [vmem:[%s203 + $0x2b8] sm:$0xff] %v582
        %839 = vst [vmem:[%s203 + $0x2c0] sm:$0xff] %v583
        %840 = vst [vmem:[%s203 + $0x2c8] sm:$0xff] %v584
        %841 = vst [vmem:[%s203 + $0x2d0] sm:$0xff] %v585
        %842 = vst [vmem:[%s203 + $0x2d8] sm:$0xff] %v586
        %843 = vst [vmem:[%s203 + $0x2e0] sm:$0xff] %v587
        %844 = vst [vmem:[%s203 + $0x2e8] sm:$0xff] %v588
        %845 = vst [vmem:[%s203 + $0x2f0] sm:$0xff] %v589
        %846 = vst [vmem:[%s203 + $0x2f8] sm:$0xff] %v590
        %847 = vst [vmem:[%s203 + $0x300] sm:$0xff] %v591
        %848 = vst [vmem:[%s203 + $0x308] sm:$0xff] %v592
        %849 = vst [vmem:[%s203 + $0x310] sm:$0xff] %v593
        %850 = vst [vmem:[%s203 + $0x318] sm:$0xff] %v594
        %851 = vst [vmem:[%s203 + $0x320] sm:$0xff] %v595
        %852 = vst [vmem:[%s203 + $0x328] sm:$0xff] %v596
        %853 = vst [vmem:[%s203 + $0x330] sm:$0xff] %v597
        %854 = vst [vmem:[%s203 + $0x338] sm:$0xff] %v598
        %855 = vst [vmem:[%s203 + $0x340] sm:$0xff] %v599
        %856 = vst [vmem:[%s203 + $0x348] sm:$0xff] %v600
        %857 = vst [vmem:[%s203 + $0x350] sm:$0xff] %v601
        %858 = vst [vmem:[%s203 + $0x358] sm:$0xff] %v602
        %859 = vst [vmem:[%s203 + $0x360] sm:$0xff] %v603
        %860 = vst [vmem:[%s203 + $0x368] sm:$0xff] %v604
        %861 = vst [vmem:[%s203 + $0x370] sm:$0xff] %v605
        %862 = vst [vmem:[%s203 + $0x378] sm:$0xff] %v606
        %863 = vst [vmem:[%s203 + $0x380] sm:$0xff] %v607
        %864 = vst [vmem:[%s203 + $0x388] sm:$0xff] %v608
        %865 = vst [vmem:[%s203 + $0x390] sm:$0xff] %v609
        %866 = vst [vmem:[%s203 + $0x398] sm:$0xff] %v610
        %867 = vst [vmem:[%s203 + $0x3a0] sm:$0xff] %v611
        %868 = vst [vmem:[%s203 + $0x3a8] sm:$0xff] %v612
        %869 = vst [vmem:[%s203 + $0x3b0] sm:$0xff] %v613
        %870 = vst [vmem:[%s203 + $0x3b8] sm:$0xff] %v614
        %871 = vst [vmem:[%s203 + $0x3c0] sm:$0xff] %v615
        %872 = vst [vmem:[%s203 + $0x3c8] sm:$0xff] %v616
        %873 = vst [vmem:[%s203 + $0x3d0] sm:$0xff] %v617
        %874 = vst [vmem:[%s203 + $0x3d8] sm:$0xff] %v618
        %875 = vst [vmem:[%s203 + $0x3e0] sm:$0xff] %v619
        %876 = vst [vmem:[%s203 + $0x3e8] sm:$0xff] %v620
        %877 = vst [vmem:[%s203 + $0x3f0] sm:$0xff] %v621
        %878 = vst [vmem:[%s203 + $0x3f8] sm:$0xff] %v622
        %879 = vst [vmem:[%s203 + $0x400] sm:$0xff] %v623
        %880 = vst [vmem:[%s203 + $0x408] sm:$0xff] %v624
        %881 = vst [vmem:[%s203 + $0x410] sm:$0xff] %v625
        %882 = vst [vmem:[%s203 + $0x418] sm:$0xff] %v626
        %883 = vst [vmem:[%s203 + $0x420] sm:$0xff] %v627
        %884 = vst [vmem:[%s203 + $0x428] sm:$0xff] %v628
        %885 = vst [vmem:[%s203 + $0x430] sm:$0xff] %v629
        %886 = vst [vmem:[%s203 + $0x438] sm:$0xff] %v630
        %887 = vst [vmem:[%s203 + $0x440] sm:$0xff] %v631
        %888 = vst [vmem:[%s203 + $0x448] sm:$0xff] %v632
        %889 = vst [vmem:[%s203 + $0x450] sm:$0xff] %v633
        %890 = vst [vmem:[%s203 + $0x458] sm:$0xff] %v634
        %891 = vst [vmem:[%s203 + $0x460] sm:$0xff] %v635
        %892 = vst [vmem:[%s203 + $0x468] sm:$0xff] %v636
        %893 = vst [vmem:[%s203 + $0x470] sm:$0xff] %v637
        %894 = vst [vmem:[%s203 + $0x478] sm:$0xff] %v638
        %895 = vst [vmem:[%s203 + $0x480] sm:$0xff] %v639
        %896 = vst [vmem:[%s203 + $0x488] sm:$0xff] %v640
        %897 = vst [vmem:[%s203 + $0x490] sm:$0xff] %v641
        %898 = vst [vmem:[%s203 + $0x498] sm:$0xff] %v642
        %899 = vst [vmem:[%s203 + $0x4a0] sm:$0xff] %v643
        %900 = vst [vmem:[%s203 + $0x4a8] sm:$0xff] %v644
        %901 = vst [vmem:[%s203 + $0x4b0] sm:$0xff] %v645
        %902 = vst [vmem:[%s203 + $0x4b8] sm:$0xff] %v646
        %903 = vst [vmem:[%s203 + $0x4c0] sm:$0xff] %v647
        %904 = vst [vmem:[%s203 + $0x4c8] sm:$0xff] %v648
        %905 = vst [vmem:[%s203 + $0x4d0] sm:$0xff] %v649
        %906 = vst [vmem:[%s203 + $0x4d8] sm:$0xff] %v650
        %907 = vst [vmem:[%s203 + $0x4e0] sm:$0xff] %v651
        %908 = vst [vmem:[%s203 + $0x4e8] sm:$0xff] %v652
        %909 = vst [vmem:[%s203 + $0x4f0] sm:$0xff] %v653
        %910 = vst [vmem:[%s203 + $0x4f8] sm:$0xff] %v654
        %911 = vst [vmem:[%s203 + $0x500] sm:$0xff] %v655
        %912 = vst [vmem:[%s203 + $0x508] sm:$0xff] %v656
        %913 = vst [vmem:[%s203 + $0x510] sm:$0xff] %v657
        %914 = vst [vmem:[%s203 + $0x518] sm:$0xff] %v658
        %915 = vst [vmem:[%s203 + $0x520] sm:$0xff] %v659
        %916 = vst [vmem:[%s203 + $0x528] sm:$0xff] %v660
        %917 = vst [vmem:[%s203 + $0x530] sm:$0xff] %v661
        %918 = vst [vmem:[%s203 + $0x538] sm:$0xff] %v662
        %919 = vst [vmem:[%s203 + $0x540] sm:$0xff] %v663
        %920 = vst [vmem:[%s203 + $0x548] sm:$0xff] %v664
        %921 = vst [vmem:[%s203 + $0x550] sm:$0xff] %v665
        %922 = vst [vmem:[%s203 + $0x558] sm:$0xff] %v666
        %923 = vst [vmem:[%s203 + $0x560] sm:$0xff] %v667
        %924 = vst [vmem:[%s203 + $0x568] sm:$0xff] %v668
        %925 = vst [vmem:[%s203 + $0x570] sm:$0xff] %v669
        %926 = vst [vmem:[%s203 + $0x578] sm:$0xff] %v670
        %927 = vst [vmem:[%s203 + $0x580] sm:$0xff] %v671
        %928 = vst [vmem:[%s203 + $0x588] sm:$0xff] %v672
        %929 = vst [vmem:[%s203 + $0x590] sm:$0xff] %v673
        %930 = vst [vmem:[%s203 + $0x598] sm:$0xff] %v674
        %931 = vst [vmem:[%s203 + $0x5a0] sm:$0xff] %v675
        %932 = vst [vmem:[%s203 + $0x5a8] sm:$0xff] %v676
        %933 = vst [vmem:[%s203 + $0x5b0] sm:$0xff] %v677
        %934 = vst [vmem:[%s203 + $0x5b8] sm:$0xff] %v678
        %935 = vst [vmem:[%s203 + $0x5c0] sm:$0xff] %v679
        %936 = vst [vmem:[%s203 + $0x5c8] sm:$0xff] %v680
        %937 = vst [vmem:[%s203 + $0x5d0] sm:$0xff] %v681
        %938 = vst [vmem:[%s203 + $0x5d8] sm:$0xff] %v682
        %939 = vst [vmem:[%s203 + $0x5e0] sm:$0xff] %v683
        %940 = vst [vmem:[%s203 + $0x5e8] sm:$0xff] %v684
        %941 = vst [vmem:[%s203 + $0x5f0] sm:$0xff] %v685
        %942 = vst [vmem:[%s203 + $0x5f8] sm:$0xff] %v686
        %943 = vst [vmem:[%s203 + $0x600] sm:$0xff] %v687
        %944 = vst [vmem:[%s203 + $0x608] sm:$0xff] %v688
        %945 = vst [vmem:[%s203 + $0x610] sm:$0xff] %v689
        %946 = vst [vmem:[%s203 + $0x618] sm:$0xff] %v690
        %947 = vst [vmem:[%s203 + $0x620] sm:$0xff] %v691
        %948 = vst [vmem:[%s203 + $0x628] sm:$0xff] %v692
        %949 = vst [vmem:[%s203 + $0x630] sm:$0xff] %v693
        %950 = vst [vmem:[%s203 + $0x638] sm:$0xff] %v694
        %951 = vst [vmem:[%s203 + $0x640] sm:$0xff] %v695
        %952 = vst [vmem:[%s203 + $0x648] sm:$0xff] %v696
        %953 = vst [vmem:[%s203 + $0x650] sm:$0xff] %v697
        %954 = vst [vmem:[%s203 + $0x658] sm:$0xff] %v698
        %955 = vst [vmem:[%s203 + $0x660] sm:$0xff] %v699
        %956 = vst [vmem:[%s203 + $0x668] sm:$0xff] %v700
        %957 = vst [vmem:[%s203 + $0x670] sm:$0xff] %v701
        %958 = vst [vmem:[%s203 + $0x678] sm:$0xff] %v702
        %959 = vst [vmem:[%s203 + $0x680] sm:$0xff] %v703
        %960 = vst [vmem:[%s203 + $0x688] sm:$0xff] %v704
        %961 = vst [vmem:[%s203 + $0x690] sm:$0xff] %v705
        %962 = vst [vmem:[%s203 + $0x698] sm:$0xff] %v706
        %963 = vst [vmem:[%s203 + $0x6a0] sm:$0xff] %v707
        %964 = vst [vmem:[%s203 + $0x6a8] sm:$0xff] %v708
        %965 = vst [vmem:[%s203 + $0x6b0] sm:$0xff] %v709
        %966 = vst [vmem:[%s203 + $0x6b8] sm:$0xff] %v710
        %967 = vst [vmem:[%s203 + $0x6c0] sm:$0xff] %v711
        %968 = vst [vmem:[%s203 + $0x6c8] sm:$0xff] %v712
        %969 = vst [vmem:[%s203 + $0x6d0] sm:$0xff] %v713
        %970 = vst [vmem:[%s203 + $0x6d8] sm:$0xff] %v714
        %971 = vst [vmem:[%s203 + $0x6e0] sm:$0xff] %v715
        %972 = vst [vmem:[%s203 + $0x6e8] sm:$0xff] %v716
        %973 = vst [vmem:[%s203 + $0x6f0] sm:$0xff] %v717
        %974 = vst [vmem:[%s203 + $0x6f8] sm:$0xff] %v718
        %975 = vst [vmem:[%s203 + $0x700] sm:$0xff] %v719
        %976 = vst [vmem:[%s203 + $0x708] sm:$0xff] %v720
        %977 = vst [vmem:[%s203 + $0x710] sm:$0xff] %v721
        %978 = vst [vmem:[%s203 + $0x718] sm:$0xff] %v722
        %979 = vst [vmem:[%s203 + $0x720] sm:$0xff] %v723
        %980 = vst [vmem:[%s203 + $0x728] sm:$0xff] %v724
        %981 = vst [vmem:[%s203 + $0x730] sm:$0xff] %v725
        %982 = vst [vmem:[%s203 + $0x738] sm:$0xff] %v726
        %983 = vst [vmem:[%s203 + $0x740] sm:$0xff] %v727
        %984 = vst [vmem:[%s203 + $0x748] sm:$0xff] %v728
        %985 = vst [vmem:[%s203 + $0x750] sm:$0xff] %v729
        %986 = vst [vmem:[%s203 + $0x758] sm:$0xff] %v730
        %987 = vst [vmem:[%s203 + $0x760] sm:$0xff] %v731
        %988 = vst [vmem:[%s203 + $0x768] sm:$0xff] %v732
        %989 = vst [vmem:[%s203 + $0x770] sm:$0xff] %v733
        %990 = vst [vmem:[%s203 + $0x778] sm:$0xff] %v734
        %991 = vst [vmem:[%s203 + $0x780] sm:$0xff] %v735
        %992 = vst [vmem:[%s203 + $0x788] sm:$0xff] %v736
        %993 = vst [vmem:[%s203 + $0x790] sm:$0xff] %v737
        %994 = vst [vmem:[%s203 + $0x798] sm:$0xff] %v738
        %995 = vst [vmem:[%s203 + $0x7a0] sm:$0xff] %v739
        %996 = vst [vmem:[%s203 + $0x7a8] sm:$0xff] %v740
        %997 = vst [vmem:[%s203 + $0x7b0] sm:$0xff] %v741
        %998 = vst [vmem:[%s203 + $0x7b8] sm:$0xff] %v742
        %999 = vst [vmem:[%s203 + $0x7c0] sm:$0xff] %v743
        %1000 = vst [vmem:[%s203 + $0x7c8] sm:$0xff] %v744
        %1001 = vst [vmem:[%s203 + $0x7d0] sm:$0xff] %v745
        %1002 = vst [vmem:[%s203 + $0x7d8] sm:$0xff] %v746
        %1003 = vst [vmem:[%s203 + $0x7e0] sm:$0xff] %v747
        %1004 = vst [vmem:[%s203 + $0x7e8] sm:$0xff] %v748
        %1005 = vst [vmem:[%s203 + $0x7f0] sm:$0xff] %v749
        %1006 = vst [vmem:[%s203 + $0x7f8] sm:$0xff] %v750
        %s1007 = sand.u32 %s82, 1
        %s1008 = scalar_lea.sflag [#allocation4], %s1007
        %s1009 = sand.u32 %s82, 1
        %s1010 = smul.addr %s1009, 2048
        %s1011 = scalar_lea.vmem [#allocation7], %s1010
        // Predicated region
        $region37: #{tpu_custom_call.1} parent=27 // pred_check
          %p1012 = pneg %p92
        $region38: #{tpu_custom_call.1} parent=27 // pred_check_branch
          %1014 = sbr.rel (%p1012) target = $region40
        $region39: #{tpu_custom_call.1} parent=27 // pred_region
          %s1015 = smul.u32 16, %s22
          %s1017 = ssub.s32 32768, 32768
          %1018 = vsyncadd %s1008, %s1017
          %s1019 = smul.addr %s1015, 16
          %s1020 = smul.addr %s1019, 128
          %s1021 = scalar_lea.hbm %s2, %s1020
          %s1022 = sshll.u32 %s1011, 4
          %s1023 = int_to_ptr.vmem [resolvable:$true] %s1022
          %1028 = dma.vmem_to_hbm [thread:$0]  %s1023, 32768, %s1021, %s1008, 2048, 2048, 128
        $region40: #{tpu_custom_call.1} parent=27 // pred_fallthru
          _
      $region28: #{tpu_custom_call.1} parent=5 // pred_fallthru
        _
      %p1029 = scmp.le.s32.totalorder 2, %s17
      // Predicated region
      $region41: #{tpu_custom_call.1} parent=5 // pred_check
        %p1030 = pneg %p1029
      $region42: #{tpu_custom_call.1} parent=5 // pred_check_branch
        %1032 = sbr.rel (%p1030) target = $region44
      $region43: #{tpu_custom_call.1} parent=5 // pred_region
        %s1033 = ssub.s32 %s17, 2
        // Predicated region
        $region45: #{tpu_custom_call.1} parent=43 // pred_check
          %p1034 = pneg %p98
        $region46: #{tpu_custom_call.1} parent=43 // pred_check_branch
          %1036 = sbr.rel (%p1034) target = $region48
        $region47: #{tpu_custom_call.1} parent=43 // pred_region
          %s1037 = sand.u32 %s83, 1
          %s1038 = scalar_lea.sflag [#allocation4], %s1037
          %s1039 = sand.u32 %s83, 1
          %s1040 = smul.addr %s1039, 2048
          %s1041 = scalar_lea.vmem [#allocation7], %s1040
          %1042 = dma.done %s1038, 32768
        $region48: #{tpu_custom_call.1} parent=43 // pred_fallthru
          _
      $region44: #{tpu_custom_call.1} parent=5 // pred_fallthru
        _
    $region6: #{tpu_custom_call.1} parent=1 // loop_footer
      %s21 = sadd.s32 1, %s17
    $region7: #{tpu_custom_call.1} parent=1 // loop_footer_branch
      %16 = sbr.rel target = $region3
    $region8: #{tpu_custom_call.1} parent=1 // loop_exit
      _
    %1043 = vsyncpa [#allocation3], 1
    %s1044 = scalar_lea.sflag [#allocation3], 1
    %1045 = vsyncpa %s1044, 1
    %1046 = vsyncpa [#allocation6], 1
    %s1047 = scalar_lea.sflag [#allocation6], 1
    %1048 = vsyncpa %s1047, 1
    %1049 = vsyncpa [#allocation4], 1
    %s1050 = scalar_lea.sflag [#allocation4], 1
    %1051 = vsyncpa %s1050, 1

</llo_original>
